<compile_context>
chip_gen: v6e
topology: v6e:2x2x1
jax: 0.10.0
libtpu: 0.0.40
codegen_flags: <defaults>
</compile_context>

<pallas_src>
import functools

import jax
import jax.numpy as jnp
from jax.experimental import pallas as pl
from jax.experimental.pallas import tpu as pltpu


def _triplet_loss_kernel(a_ref, p_ref, n_ref, partial_ref, *, margin, eps,
                         batch, block_rows):
    i = pl.program_id(0)

    a = a_ref[...].astype(jnp.float32)   # (TB, D)
    p = p_ref[...].astype(jnp.float32)
    n = n_ref[...].astype(jnp.float32)

    # Row-wise dot products and squared L2 norms (lane-axis reductions).
    dot_ap = jnp.sum(a * p, axis=-1, keepdims=True)          # (TB, 1)
    dot_an = jnp.sum(a * n, axis=-1, keepdims=True)
    sq_a = jnp.sum(a * a, axis=-1, keepdims=True)
    sq_p = jnp.sum(p * p, axis=-1, keepdims=True)
    sq_n = jnp.sum(n * n, axis=-1, keepdims=True)

    norm_a = jnp.sqrt(sq_a)
    norm_p = jnp.sqrt(sq_p)
    norm_n = jnp.sqrt(sq_n)

    # PyTorch nn.CosineSimilarity semantics: dot / max(||x|| * ||y||, eps).
    # The divide is an EUP approximate reciprocal (off the VALU critical path).
    cos_pos = dot_ap * pl.reciprocal(jnp.maximum(norm_a * norm_p, eps),
                                     approx=True)
    cos_neg = dot_an * pl.reciprocal(jnp.maximum(norm_a * norm_n, eps),
                                     approx=True)

    losses = jnp.maximum(margin - cos_pos + cos_neg, 0.0)    # (TB, 1)

    # Mask padded rows of a remainder tile (data past row `batch` is garbage).
    row_ids = jax.lax.broadcasted_iota(jnp.int32, losses.shape, 0) \
        + i * block_rows
    losses = jnp.where(row_ids < batch, losses, 0.0)

    # Per-tile partial sum; the wrapper divides by the true batch size.
    partial_ref[...] = jnp.sum(losses, axis=0, keepdims=True).reshape(1, 1, 1)


def _choose_block_rows(batch, feat, itemsize,
                       vmem_budget_bytes=8 * 1024 * 1024):
    """Largest row tile whose double-buffered inputs fit a conservative VMEM
    budget (safe under the v5e 16 MiB default scoped limit)."""
    per_row_bytes = 3 * 2 * feat * itemsize   # 3 inputs x 2 pipeline buffers
    tb = max(8, vmem_budget_bytes // per_row_bytes)
    tb = min(int(tb), 1024)
    return tb


def triplet_loss(anchor, positive, negative, margin=1.0, eps=1e-8,
                 block_rows=None):
    """Mean triplet loss with cosine similarity along the last axis.

    Inputs are [..., D] (any float dtype); leading dims are flattened into a
    batch axis, matching CosineSimilarity(dim=-1) followed by .mean().
    Returns a scalar float32.
    """
    assert anchor.shape == positive.shape == negative.shape
    feat = anchor.shape[-1]
    anchor = anchor.reshape(-1, feat)
    positive = positive.reshape(-1, feat)
    negative = negative.reshape(-1, feat)
    batch = anchor.shape[0]

    itemsize = anchor.dtype.itemsize
    # Sublane alignment for sub-32-bit dtypes: 8 (f32), 16 (bf16), 32 (int8).
    row_align = 8 * max(1, 4 // itemsize)

    if block_rows is None:
        block_rows = _choose_block_rows(batch, feat, itemsize)
    if block_rows >= batch:
        block_rows = batch            # block rows == full array rows: legal
    else:
        block_rows = max(row_align, (block_rows // row_align) * row_align)
        if block_rows >= batch:
            block_rows = batch

    num_tiles = pl.cdiv(batch, block_rows)

    kernel = functools.partial(
        _triplet_loss_kernel,
        margin=float(margin),
        eps=float(eps),
        batch=batch,
        block_rows=block_rows,
    )

    cost = pl.CostEstimate(
        flops=10 * batch * feat,
        transcendentals=5 * batch,          # 3x sqrt + 2x reciprocal per row
        bytes_accessed=3 * batch * feat * itemsize + num_tiles * 4,
    )

    partials = pl.pallas_call(
        kernel,
        out_shape=jax.ShapeDtypeStruct((num_tiles, 1, 1), jnp.float32),
        grid=(num_tiles,),
        in_specs=[
            pl.BlockSpec((block_rows, feat), lambda i: (i, 0)),
            pl.BlockSpec((block_rows, feat), lambda i: (i, 0)),
            pl.BlockSpec((block_rows, feat), lambda i: (i, 0)),
        ],
        out_specs=pl.BlockSpec((1, 1, 1), lambda i: (i, 0, 0)),
        compiler_params=pltpu.CompilerParams(
            dimension_semantics=("parallel",),
        ),
        cost_estimate=cost,
    )(anchor, positive, negative)

    return jnp.sum(partials) / jnp.float32(batch)


if __name__ == "__main__":
    key = jax.random.PRNGKey(0)
    margin = 0.5

    def ref_loss(a, p, n, margin, eps=1e-8):
        a = a.astype(jnp.float32)
        p = p.astype(jnp.float32)
        n = n.astype(jnp.float32)
        na = jnp.linalg.norm(a, axis=-1)
        npos = jnp.linalg.norm(p, axis=-1)
        nneg = jnp.linalg.norm(n, axis=-1)
        cp = jnp.sum(a * p, -1) / jnp.maximum(na * npos, eps)
        cn = jnp.sum(a * n, -1) / jnp.maximum(na * nneg, eps)
        return jnp.mean(jnp.maximum(margin - cp + cn, 0.0))

    # Tolerance accounts for the EUP approximate reciprocal.
    ATOL = RTOL = 2e-3

    # Test 1: bf16 inputs (halved HBM traffic), exact multiple of the tile.
    ka, kp, kn = jax.random.split(jax.random.fold_in(key, 1), 3)
    B, D = 32, 256
    a = jax.random.normal(ka, (B, D), dtype=jnp.bfloat16)
    p = jax.random.normal(kp, (B, D), dtype=jnp.bfloat16)
    n = jax.random.normal(kn, (B, D), dtype=jnp.bfloat16)
    loss = jax.block_until_ready(
        triplet_loss(a, p, n, margin=margin, block_rows=16))  # grid = 2 tiles
    want = ref_loss(a, p, n, margin)
    assert jnp.allclose(loss, want, atol=ATOL, rtol=RTOL), (loss, want)

    # Test 2: f32 inputs, batch NOT a multiple of the tile -> masked remainder.
    ka, kp, kn = jax.random.split(jax.random.fold_in(key, 2), 3)
    B, D = 12, 128
    a = jax.random.normal(ka, (B, D), dtype=jnp.float32)
    p = jax.random.normal(kp, (B, D), dtype=jnp.float32)
    n = jax.random.normal(kn, (B, D), dtype=jnp.float32)
    loss = jax.block_until_ready(
        triplet_loss(a, p, n, margin=margin, block_rows=8))   # grid = 2 tiles
    want = ref_loss(a, p, n, margin)
    assert jnp.allclose(loss, want, atol=ATOL, rtol=RTOL), (loss, want)

    print("KERNEL_OK")
</pallas_src>

<mosaic_0001>
module attributes {stable_mosaic.version = 11 : i64} {
  func.func @_triplet_loss_kernel(%arg0: i32, %arg1: memref<16x256xbf16, #tpu.memory_space<vmem>>, %arg2: memref<16x256xbf16, #tpu.memory_space<vmem>>, %arg3: memref<16x256xbf16, #tpu.memory_space<vmem>>, %arg4: memref<1x1x1xf32, #tpu.memory_space<vmem>>) attributes {dimension_semantics = [#tpu.dimension_semantics<parallel>], iteration_bounds = array<i64: 2>, scalar_prefetch = 0 : i64, scratch_operands = 0 : i64, tpu.core_type = #tpu.core_type<tc>, window_params = [{transform_indices = @transform_0, window_bounds = array<i64: 16, 256>}, {transform_indices = @transform_1, window_bounds = array<i64: 16, 256>}, {transform_indices = @transform_2, window_bounds = array<i64: 16, 256>}, {transform_indices = @transform_3, window_bounds = array<i64: 1, 1, 1>}]} {
    %c0 = arith.constant 0 : index
    %c0_0 = arith.constant 0 : index
    %0 = vector.load %arg1[%c0, %c0_0] : memref<16x256xbf16, #tpu.memory_space<vmem>>, vector<16x256xbf16>
    %1 = arith.extf %0 : vector<16x256xbf16> to vector<16x256xf32>
    %c0_1 = arith.constant 0 : index
    %c0_2 = arith.constant 0 : index
    %2 = vector.load %arg2[%c0_1, %c0_2] : memref<16x256xbf16, #tpu.memory_space<vmem>>, vector<16x256xbf16>
    %3 = arith.extf %2 : vector<16x256xbf16> to vector<16x256xf32>
    %c0_3 = arith.constant 0 : index
    %c0_4 = arith.constant 0 : index
    %4 = vector.load %arg3[%c0_3, %c0_4] : memref<16x256xbf16, #tpu.memory_space<vmem>>, vector<16x256xbf16>
    %5 = arith.extf %4 : vector<16x256xbf16> to vector<16x256xf32>
    %6 = arith.mulf %1, %3 : vector<16x256xf32>
    %cst = arith.constant dense<0.000000e+00> : vector<16xf32>
    %7 = vector.multi_reduction <add>, %6, %cst [1] : vector<16x256xf32> to vector<16xf32>
    %8 = vector.shape_cast %7 : vector<16xf32> to vector<16x1xf32>
    %9 = arith.mulf %1, %5 : vector<16x256xf32>
    %cst_5 = arith.constant dense<0.000000e+00> : vector<16xf32>
    %10 = vector.multi_reduction <add>, %9, %cst_5 [1] : vector<16x256xf32> to vector<16xf32>
    %11 = vector.shape_cast %10 : vector<16xf32> to vector<16x1xf32>
    %12 = arith.mulf %1, %1 : vector<16x256xf32>
    %cst_6 = arith.constant dense<0.000000e+00> : vector<16xf32>
    %13 = vector.multi_reduction <add>, %12, %cst_6 [1] : vector<16x256xf32> to vector<16xf32>
    %14 = vector.shape_cast %13 : vector<16xf32> to vector<16x1xf32>
    %15 = arith.mulf %3, %3 : vector<16x256xf32>
    %cst_7 = arith.constant dense<0.000000e+00> : vector<16xf32>
    %16 = vector.multi_reduction <add>, %15, %cst_7 [1] : vector<16x256xf32> to vector<16xf32>
    %17 = vector.shape_cast %16 : vector<16xf32> to vector<16x1xf32>
    %18 = arith.mulf %5, %5 : vector<16x256xf32>
    %cst_8 = arith.constant dense<0.000000e+00> : vector<16xf32>
    %19 = vector.multi_reduction <add>, %18, %cst_8 [1] : vector<16x256xf32> to vector<16xf32>
    %20 = vector.shape_cast %19 : vector<16xf32> to vector<16x1xf32>
    %21 = math.sqrt %14 : vector<16x1xf32>
    %22 = math.sqrt %17 : vector<16x1xf32>
    %23 = math.sqrt %20 : vector<16x1xf32>
    %24 = arith.mulf %21, %22 : vector<16x1xf32>
    %cst_9 = arith.constant 9.99999993E-9 : f32
    %25 = vector.broadcast %cst_9 : f32 to vector<16x1xf32>
    %26 = arith.maximumf %24, %25 : vector<16x1xf32>
    %27 = tpu.reciprocal %26 {approx = true} : vector<16x1xf32> -> vector<16x1xf32>
    %28 = arith.mulf %8, %27 : vector<16x1xf32>
    %29 = arith.mulf %21, %23 : vector<16x1xf32>
    %cst_10 = arith.constant 9.99999993E-9 : f32
    %30 = vector.broadcast %cst_10 : f32 to vector<16x1xf32>
    %31 = arith.maximumf %29, %30 : vector<16x1xf32>
    %32 = tpu.reciprocal %31 {approx = true} : vector<16x1xf32> -> vector<16x1xf32>
    %33 = arith.mulf %11, %32 : vector<16x1xf32>
    %cst_11 = arith.constant 5.000000e-01 : f32
    %34 = vector.broadcast %cst_11 : f32 to vector<16x1xf32>
    %35 = arith.subf %34, %28 : vector<16x1xf32>
    %36 = arith.addf %35, %33 : vector<16x1xf32>
    %cst_12 = arith.constant 0.000000e+00 : f32
    %37 = vector.broadcast %cst_12 : f32 to vector<16x1xf32>
    %38 = arith.maximumf %36, %37 : vector<16x1xf32>
    %39 = tpu.iota {dimensions = array<i32: 0>} : vector<16x1xi32>
    %c16_i32 = arith.constant 16 : i32
    %40 = arith.muli %arg0, %c16_i32 : i32
    %41 = vector.broadcast %40 : i32 to vector<16x1xi32>
    %42 = arith.addi %39, %41 : vector<16x1xi32>
    %c32_i32 = arith.constant 32 : i32
    %43 = vector.broadcast %c32_i32 : i32 to vector<16x1xi32>
    %44 = arith.cmpi slt, %42, %43 : vector<16x1xi32>
    %cst_13 = arith.constant 0.000000e+00 : f32
    %45 = vector.broadcast %cst_13 : f32 to vector<16x1xf32>
    %46 = arith.select %44, %38, %45 : vector<16x1xi1>, vector<16x1xf32>
    %cst_14 = arith.constant dense<0.000000e+00> : vector<1xf32>
    %47 = vector.multi_reduction <add>, %46, %cst_14 [0] : vector<16x1xf32> to vector<1xf32>
    %48 = vector.shape_cast %47 : vector<1xf32> to vector<1x1xf32>
    %49 = vector.shape_cast %48 : vector<1x1xf32> to vector<1x1x1xf32>
    %c0_15 = arith.constant 0 : index
    %c0_16 = arith.constant 0 : index
    %c0_17 = arith.constant 0 : index
    %50 = vector.load %arg4[%c0_15, %c0_16, %c0_17] : memref<1x1x1xf32, #tpu.memory_space<vmem>>, vector<1x1x1xf32>
    tpu.vector_store %arg4[%c0_15, %c0_16, %c0_17], %49 {strides = array<i32>} : memref<1x1x1xf32, #tpu.memory_space<vmem>>, vector<1x1x1xf32>,
    return
  }
  func.func @transform_0(%arg0: i32) -> (i32, i32) {
    %c0_i32 = arith.constant 0 : i32
    %c0_i32_0 = arith.constant 0 : i32
    return %arg0, %c0_i32 : i32, i32
  }
  func.func @transform_1(%arg0: i32) -> (i32, i32) {
    %c0_i32 = arith.constant 0 : i32
    %c0_i32_0 = arith.constant 0 : i32
    return %arg0, %c0_i32 : i32, i32
  }
  func.func @transform_2(%arg0: i32) -> (i32, i32) {
    %c0_i32 = arith.constant 0 : i32
    %c0_i32_0 = arith.constant 0 : i32
    return %arg0, %c0_i32 : i32, i32
  }
  func.func @transform_3(%arg0: i32) -> (i32, i32, i32) {
    %c0_i32 = arith.constant 0 : i32
    %c0_i32_0 = arith.constant 0 : i32
    %c0_i32_1 = arith.constant 0 : i32
    return %arg0, %c0_i32, %c0_i32_0 : i32, i32, i32
  }
}

</mosaic_0001>

<llo_original>
// kernel: tpu_custom_call.1
$region0: #{tpu_custom_call.1}
  #allocation0 [shape = 'u32[]', space=smem, size = 0x4, offset = 0x4, fixed_abs, tag = 'smem constant byte address 0x4 - core index']
  #allocation1 [shape = 'u32[144,128]{1,0:T(1,128)}', space=vmem, size = 0x12000, scoped, tag = 'internal scratch']
  %s0 = inlined_call_operand.hbm [shape: bf16[32,256], index: 0, kind: input, shape index: {}]
  %s1 = inlined_call_operand.hbm [shape: bf16[32,256], index: 1, kind: input, shape index: {}]
  %s2 = inlined_call_operand.hbm [shape: bf16[32,256], index: 2, kind: input, shape index: {}]
  %s3 = inlined_call_operand.vmem [shape: f32[2,1,1], index: 3, kind: output, shape index: {}]
  %s4 = sld [smem:[#allocation0]]
  $region57: #{tpu_custom_call.1} parent=0
    _
  %s6 = ssub.s32 1, %s4
  %s7 = scalar_select 0, %s6, %s4
  $region1: #{tpu_custom_call.1} parent=0
    #allocation2 [shape = 'u8[16384]{0}', space=vmem, size = 0x4000, scoped, tag = 'input window, operand 0']
    #allocation3 [shape = 's32[2]{0}', space=sflag, size = 0x8, scoped, tag = 'scoped memory for tpu_custom_call.1']
    #allocation4 [shape = 'u8[16384]{0}', space=vmem, size = 0x4000, scoped, tag = 'input window, operand 1']
    #allocation5 [shape = 's32[2]{0}', space=sflag, size = 0x8, scoped, tag = 'scoped memory for tpu_custom_call.1']
    #allocation6 [shape = 'u8[16384]{0}', space=vmem, size = 0x4000, scoped, tag = 'input window, operand 2']
    %8 = vsyncpa [#allocation3], 0
    %s9 = scalar_lea.sflag [#allocation3], 1
    %10 = vsyncpa %s9, 0
    %11 = vsyncpa [#allocation5], 0
    %s12 = scalar_lea.sflag [#allocation5], 1
    %13 = vsyncpa %s12, 0
    loop: start=0, step=1, limit=4
    $region2: #{tpu_custom_call.1} parent=1 // loop_pre_header
      _
    $region3: #{tpu_custom_call.1} parent=1 // loop_header
      %s15 = sphi 0, %s19
      %p16 = scmp.ge.s32.totalorder %s15, 4
      %s25 = sphi 0, %s27
      %s28 = sphi 0, %s25
      %s29 = sphi 0, %s28
      %s45 = sphi 0, %s29
      %s51 = sphi 0, %s53
      %s54 = sphi 0, %s51
      %s55 = sphi 0, %s54
      %s71 = sphi 0, %s55
      %s77 = sphi 0, %s79
      %s80 = sphi 0, %s77
      %s81 = sphi 0, %s80
      %s97 = sphi 0, %s81
      %s103 = sphi 0, %s105
      %s106 = sphi 0, %s103
      %s107 = sphi 0, %s106
      %s123 = sphi 0, %s107
    $region4: #{tpu_custom_call.1} parent=1 // loop_header_branch
      %18 = sbr.rel (%p16) target = $region8
    $region5: #{tpu_custom_call.1} parent=1 // loop_body
      %s20 = ssub.s32 %s15, 1
      %s21 = ssub.s32 %s15, 2
      %s22 = sadd.s32 %s15, 1
      %s23 = ssub.s32 %s15, %s22
      %p24 = scmp.eq.s32.totalorder %s23, 0
      %s26 = sadd.s32 %s25, 1
      %s27 = scalar_select %p24, %s25, %s26
      %p30 = pneg %p24
      %p31 = scmp.eq.s32.totalorder %s15, 1
      %p32 = por %p30, %p31
      %p33 = scmp.ne.s32.totalorder %s25, %s28
      %p34 = scmp.eq.s32.totalorder %s15, 0
      %p35 = por %p33, %p34
      %p36 = scmp.ne.s32.totalorder %s25, %s28
      %p37 = scmp.eq.s32.totalorder %s20, 1
      %p38 = por %p36, %p37
      %p39 = scmp.ne.s32.totalorder %s28, %s29
      %p40 = scmp.eq.s32.totalorder %s20, 0
      %p41 = por %p39, %p40
      %p42 = scmp.ne.s32.totalorder %s28, %s29
      %p43 = scmp.eq.s32.totalorder %s21, 1
      %p44 = por %p42, %p43
      %p46 = scmp.ne.s32.totalorder %s29, %s45
      %p47 = scmp.eq.s32.totalorder %s21, 0
      %p48 = por %p46, %p47
      %s49 = ssub.s32 %s15, %s22
      %p50 = scmp.eq.s32.totalorder %s49, 0
      %s52 = sadd.s32 %s51, 1
      %s53 = scalar_select %p50, %s51, %s52
      %p56 = pneg %p50
      %p57 = scmp.eq.s32.totalorder %s15, 1
      %p58 = por %p56, %p57
      %p59 = scmp.ne.s32.totalorder %s51, %s54
      %p60 = scmp.eq.s32.totalorder %s15, 0
      %p61 = por %p59, %p60
      %p62 = scmp.ne.s32.totalorder %s51, %s54
      %p63 = scmp.eq.s32.totalorder %s20, 1
      %p64 = por %p62, %p63
      %p65 = scmp.ne.s32.totalorder %s54, %s55
      %p66 = scmp.eq.s32.totalorder %s20, 0
      %p67 = por %p65, %p66
      %p68 = scmp.ne.s32.totalorder %s54, %s55
      %p69 = scmp.eq.s32.totalorder %s21, 1
      %p70 = por %p68, %p69
      %p72 = scmp.ne.s32.totalorder %s55, %s71
      %p73 = scmp.eq.s32.totalorder %s21, 0
      %p74 = por %p72, %p73
      %s75 = ssub.s32 %s15, %s22
      %p76 = scmp.eq.s32.totalorder %s75, 0
      %s78 = sadd.s32 %s77, 1
      %s79 = scalar_select %p76, %s77, %s78
      %p82 = pneg %p76
      %p83 = scmp.eq.s32.totalorder %s15, 1
      %p84 = por %p82, %p83
      %p85 = scmp.ne.s32.totalorder %s77, %s80
      %p86 = scmp.eq.s32.totalorder %s15, 0
      %p87 = por %p85, %p86
      %p88 = scmp.ne.s32.totalorder %s77, %s80
      %p89 = scmp.eq.s32.totalorder %s20, 1
      %p90 = por %p88, %p89
      %p91 = scmp.ne.s32.totalorder %s80, %s81
      %p92 = scmp.eq.s32.totalorder %s20, 0
      %p93 = por %p91, %p92
      %p94 = scmp.ne.s32.totalorder %s80, %s81
      %p95 = scmp.eq.s32.totalorder %s21, 1
      %p96 = por %p94, %p95
      %p98 = scmp.ne.s32.totalorder %s81, %s97
      %p99 = scmp.eq.s32.totalorder %s21, 0
      %p100 = por %p98, %p99
      %s101 = ssub.s32 %s15, %s22
      %p102 = scmp.eq.s32.totalorder %s101, 0
      %s104 = sadd.s32 %s103, 1
      %s105 = scalar_select %p102, %s103, %s104
      %p108 = pneg %p102
      %p109 = scmp.eq.s32.totalorder %s15, 1
      %p110 = por %p108, %p109
      %p111 = scmp.ne.s32.totalorder %s103, %s106
      %p112 = scmp.eq.s32.totalorder %s15, 0
      %p113 = por %p111, %p112
      %p114 = scmp.ne.s32.totalorder %s103, %s106
      %p115 = scmp.eq.s32.totalorder %s20, 1
      %p116 = por %p114, %p115
      %p117 = scmp.ne.s32.totalorder %s106, %s107
      %p118 = scmp.eq.s32.totalorder %s20, 0
      %p119 = por %p117, %p118
      %p120 = scmp.ne.s32.totalorder %s106, %s107
      %p121 = scmp.eq.s32.totalorder %s21, 1
      %p122 = por %p120, %p121
      %p124 = scmp.ne.s32.totalorder %s107, %s123
      %p125 = scmp.eq.s32.totalorder %s21, 0
      %p126 = por %p124, %p125
      %p127 = scmp.le.s32.totalorder 1, %s15
      %p128 = scmp.lt.s32.totalorder %s15, 3
      %p129 = pnand %p127, %p128
      %p130 = pneg %p129
      // Predicated region
      $region9: #{tpu_custom_call.1} parent=5 // pred_check
        _
      $region10: #{tpu_custom_call.1} parent=5 // pred_check_branch
        %132 = sbr.rel (%p129) target = $region12
      $region11: #{tpu_custom_call.1} parent=5 // pred_region
        %s133 = ssub.s32 %s15, 1
      $region12: #{tpu_custom_call.1} parent=5 // pred_fallthru
        _
      %p134 = scmp.lt.s32.totalorder %s15, 2
      // Predicated region
      $region13: #{tpu_custom_call.1} parent=5 // pred_check
        %p135 = pneg %p134
      $region14: #{tpu_custom_call.1} parent=5 // pred_check_branch
        %137 = sbr.rel (%p135) target = $region16
      $region15: #{tpu_custom_call.1} parent=5 // pred_region
        // Predicated region
        $region17: #{tpu_custom_call.1} parent=15 // pred_check
          %p138 = pneg %p35
        $region18: #{tpu_custom_call.1} parent=15 // pred_check_branch
          %140 = sbr.rel (%p138) target = $region20
        $region19: #{tpu_custom_call.1} parent=15 // pred_region
          %s141 = sand.u32 %s25, 1
          %s142 = scalar_lea.sflag [#allocation3], %s141
          %s143 = sand.u32 %s25, 1
          %s144 = smul.addr %s143, 16
          %s145 = scalar_lea.vmem [#allocation2], %s144
          %s146 = smul.u32 2, %s15
          %s148 = ssub.s32 256, 256
          %149 = vsyncadd %s142, %s148
          %s150 = smul.addr %s146, 2
          %s151 = smul.addr %s150, 64
          %s152 = scalar_lea.hbm %s0, %s151
          %s153 = sshll.u32 %s145, 4
          %s154 = int_to_ptr.vmem [resolvable:$true] %s153
          %159 = dma.hbm_to_vmem [thread:$0]  %s152, 256, %s154, %s142, 128, 128, 8
        $region20: #{tpu_custom_call.1} parent=15 // pred_fallthru
          _
        // Predicated region
        $region21: #{tpu_custom_call.1} parent=15 // pred_check
          %p160 = pneg %p61
        $region22: #{tpu_custom_call.1} parent=15 // pred_check_branch
          %162 = sbr.rel (%p160) target = $region24
        $region23: #{tpu_custom_call.1} parent=15 // pred_region
          %s163 = sand.u32 %s15, 1
          %s164 = scalar_lea.sflag [#allocation5], %s163
          %s165 = sand.u32 %s51, 1
          %s166 = smul.addr %s165, 16
          %s167 = scalar_lea.vmem [#allocation4], %s166
          %s168 = smul.u32 2, %s15
          %s170 = ssub.s32 256, 256
          %171 = vsyncadd %s164, %s170
          %s172 = smul.addr %s168, 2
          %s173 = smul.addr %s172, 64
          %s174 = scalar_lea.hbm %s1, %s173
          %s175 = sshll.u32 %s167, 4
          %s176 = int_to_ptr.vmem [resolvable:$true] %s175
          %181 = dma.hbm_to_vmem [thread:$0]  %s174, 256, %s176, %s164, 128, 128, 8
        $region24: #{tpu_custom_call.1} parent=15 // pred_fallthru
          _
        // Predicated region
        $region25: #{tpu_custom_call.1} parent=15 // pred_check
          %p182 = pneg %p87
        $region26: #{tpu_custom_call.1} parent=15 // pred_check_branch
          %184 = sbr.rel (%p182) target = $region28
        $region27: #{tpu_custom_call.1} parent=15 // pred_region
          %s185 = sand.u32 %s15, 1
          %s186 = scalar_lea.sflag [#allocation5], %s185
          %s187 = sand.u32 %s77, 1
          %s188 = smul.addr %s187, 16
          %s189 = scalar_lea.vmem [#allocation6], %s188
          %s190 = smul.u32 2, %s15
          %s192 = ssub.s32 256, 256
          %193 = vsyncadd %s186, %s192
          %s194 = smul.addr %s190, 2
          %s195 = smul.addr %s194, 64
          %s196 = scalar_lea.hbm %s2, %s195
          %s197 = sshll.u32 %s189, 4
          %s198 = int_to_ptr.vmem [resolvable:$true] %s197
          %203 = dma.hbm_to_vmem [thread:$0]  %s196, 256, %s198, %s186, 128, 128, 8
        $region28: #{tpu_custom_call.1} parent=15 // pred_fallthru
          _
      $region16: #{tpu_custom_call.1} parent=5 // pred_fallthru
        _
      %p204 = scmp.le.s32.totalorder 1, %s15
      %p205 = scmp.lt.s32.totalorder %s15, 3
      %p206 = pnand %p204, %p205
      %p207 = pneg %p206
      // Predicated region
      $region29: #{tpu_custom_call.1} parent=5 // pred_check
        _
      $region30: #{tpu_custom_call.1} parent=5 // pred_check_branch
        %209 = sbr.rel (%p206) target = $region32
      $region31: #{tpu_custom_call.1} parent=5 // pred_region
        %s210 = ssub.s32 %s15, 1
        %s211 = sand.u32 %s28, 1
        %s212 = scalar_lea.sflag [#allocation3], %s211
        %s213 = sand.u32 %s28, 1
        %s214 = smul.addr %s213, 16
        %s215 = scalar_lea.vmem [#allocation2], %s214
        // Predicated region
        $region33: #{tpu_custom_call.1} parent=31 // pred_check
          %p216 = pneg %p41
        $region34: #{tpu_custom_call.1} parent=31 // pred_check_branch
          %218 = sbr.rel (%p216) target = $region36
        $region35: #{tpu_custom_call.1} parent=31 // pred_region
          %219 = dma.done %s212, 256
        $region36: #{tpu_custom_call.1} parent=31 // pred_fallthru
          _
        %s220 = sand.u32 %s20, 1
        %s221 = scalar_lea.sflag [#allocation5], %s220
        %s222 = sand.u32 %s54, 1
        %s223 = smul.addr %s222, 16
        %s224 = scalar_lea.vmem [#allocation4], %s223
        // Predicated region
        $region37: #{tpu_custom_call.1} parent=31 // pred_check
          %p225 = pneg %p67
        $region38: #{tpu_custom_call.1} parent=31 // pred_check_branch
          %227 = sbr.rel (%p225) target = $region40
        $region39: #{tpu_custom_call.1} parent=31 // pred_region
          %228 = dma.done %s221, 256
        $region40: #{tpu_custom_call.1} parent=31 // pred_fallthru
          _
        %s229 = sand.u32 %s20, 1
        %s230 = scalar_lea.sflag [#allocation5], %s229
        %s231 = sand.u32 %s80, 1
        %s232 = smul.addr %s231, 16
        %s233 = scalar_lea.vmem [#allocation6], %s232
        // Predicated region
        $region41: #{tpu_custom_call.1} parent=31 // pred_check
          %p234 = pneg %p93
        $region42: #{tpu_custom_call.1} parent=31 // pred_check_branch
          %236 = sbr.rel (%p234) target = $region44
        $region43: #{tpu_custom_call.1} parent=31 // pred_region
          %237 = dma.done %s230, 256
        $region44: #{tpu_custom_call.1} parent=31 // pred_fallthru
          _
        %s238 = sand.u32 %s28, 1
        %s239 = scalar_lea.sflag [#allocation3], %s238
        %s240 = sand.u32 %s28, 1
        %s241 = smul.addr %s240, 16
        %s242 = scalar_lea.vmem [#allocation2], %s241
        %p243 = pneg %p41
        %p244 = pneg %p38
        %s245 = sand.u32 %s20, 1
        %s246 = scalar_lea.sflag [#allocation5], %s245
        %s247 = sand.u32 %s54, 1
        %s248 = smul.addr %s247, 16
        %s249 = scalar_lea.vmem [#allocation4], %s248
        %p250 = pneg %p67
        %p251 = pneg %p64
        %s252 = sand.u32 %s20, 1
        %s253 = scalar_lea.sflag [#allocation5], %s252
        %s254 = sand.u32 %s80, 1
        %s255 = smul.addr %s254, 16
        %s256 = scalar_lea.vmem [#allocation6], %s255
        %p257 = pneg %p93
        %p258 = pneg %p90
        %p259 = pneg %p119
        %p260 = pneg %p116
        %p261 = scmp.lt.s32.totalorder %s20, 1
        %s262 = scalar_select %p261, %s20, 1
        %s263 = scalar_lea.vmem %s3, %s262
        %s264 = smul.u32 2, %s20
        %s265 = smul.u32 2, %s20
        %s266 = smul.u32 2, %s20
        %p267 = scmp.lt.s32.totalorder %s20, 1
        %s268 = scalar_select %p267, %s20, 1
        %s269 = scalar_lea.vmem %s3, %s268
        %v270 = vld [vmem:[%s215] sm:$0xff]
        %v271 = vld [vmem:[%s215 + $0x8] sm:$0xff]
        %v272 = vunpack.c.l.bf16 %v270
        %v273 = vunpack.c.h.bf16 %v270
        %v274 = vunpack.c.l.bf16 %v271
        %v275 = vunpack.c.h.bf16 %v271
        %v276 = vld [vmem:[%s224] sm:$0xff]
        %v277 = vld [vmem:[%s224 + $0x8] sm:$0xff]
        %v278 = vunpack.c.l.bf16 %v276
        %v279 = vunpack.c.h.bf16 %v276
        %v280 = vunpack.c.l.bf16 %v277
        %v281 = vunpack.c.h.bf16 %v277
        %v282 = vld [vmem:[%s233] sm:$0xff]
        %v283 = vld [vmem:[%s233 + $0x8] sm:$0xff]
        %v284 = vunpack.c.l.bf16 %v282
        %v285 = vunpack.c.h.bf16 %v282
        %v286 = vunpack.c.l.bf16 %v283
        %v287 = vunpack.c.h.bf16 %v283
        %v288 = vmul.f32 %v272, %v278
        %v289 = vmul.f32 %v273, %v279
        %v290 = vmul.f32 %v274, %v280
        %v291 = vmul.f32 %v275, %v281
        %v292 = vadd.f32 %v288, %v289
        %293 = vadd.xlane.f32.xlu0 %v292
        %v294 = vpop.xlane.xlu0 %293
        %v295 = vadd.f32 %v290, %v291
        %296 = vadd.xlane.f32.xlu0 %v295
        %v297 = vpop.xlane.xlu0 %296
        %v298 = vmul.f32 %v272, %v284
        %v299 = vmul.f32 %v273, %v285
        %v300 = vmul.f32 %v274, %v286
        %v301 = vmul.f32 %v275, %v287
        %v302 = vadd.f32 %v298, %v299
        %303 = vadd.xlane.f32.xlu0 %v302
        %v304 = vpop.xlane.xlu0 %303
        %v305 = vadd.f32 %v300, %v301
        %306 = vadd.xlane.f32.xlu0 %v305
        %v307 = vpop.xlane.xlu0 %306
        %v308 = vmul.f32 %v272, %v272
        %v309 = vmul.f32 %v273, %v273
        %v310 = vmul.f32 %v274, %v274
        %v311 = vmul.f32 %v275, %v275
        %v312 = vadd.f32 %v308, %v309
        %313 = vadd.xlane.f32.xlu0 %v312
        %v314 = vpop.xlane.xlu0 %313
        %v315 = vadd.f32 %v310, %v311
        %316 = vadd.xlane.f32.xlu0 %v315
        %v317 = vpop.xlane.xlu0 %316
        %v318 = vmul.f32 %v278, %v278
        %v319 = vmul.f32 %v279, %v279
        %v320 = vmul.f32 %v280, %v280
        %v321 = vmul.f32 %v281, %v281
        %v322 = vadd.f32 %v318, %v319
        %323 = vadd.xlane.f32.xlu0 %v322
        %v324 = vpop.xlane.xlu0 %323
        %v325 = vadd.f32 %v320, %v321
        %326 = vadd.xlane.f32.xlu0 %v325
        %v327 = vpop.xlane.xlu0 %326
        %v328 = vmul.f32 %v284, %v284
        %v329 = vmul.f32 %v285, %v285
        %v330 = vmul.f32 %v286, %v286
        %v331 = vmul.f32 %v287, %v287
        %v332 = vadd.f32 %v328, %v329
        %333 = vadd.xlane.f32.xlu0 %v332
        %v334 = vpop.xlane.xlu0 %333
        %v335 = vadd.f32 %v330, %v331
        %336 = vadd.xlane.f32.xlu0 %v335
        %v337 = vpop.xlane.xlu0 %336
        %v338 = vrsqrt.pop %v314
        %v339 = vmul.f32 %v314, %v338
        %vm340 = vcmp.eq.f32.partialorder %v314, inf
        %v341 = vsel %vm340, %v314, %v339
        %vm342 = vcmp.eq.f32.partialorder %v314, 0.0
        %v343 = vand.u32 %v314, 2147483648
        %v344 = vsel %vm342, %v343, %v341
        %v345 = vrsqrt.pop %v317
        %v346 = vmul.f32 %v317, %v345
        %vm347 = vcmp.eq.f32.partialorder %v317, inf
        %v348 = vsel %vm347, %v317, %v346
        %vm349 = vcmp.eq.f32.partialorder %v317, 0.0
        %v350 = vand.u32 %v317, 2147483648
        %v351 = vsel %vm349, %v350, %v348
        %v352 = vrsqrt.pop %v324
        %v353 = vmul.f32 %v324, %v352
        %vm354 = vcmp.eq.f32.partialorder %v324, inf
        %v355 = vsel %vm354, %v324, %v353
        %vm356 = vcmp.eq.f32.partialorder %v324, 0.0
        %v357 = vand.u32 %v324, 2147483648
        %v358 = vsel %vm356, %v357, %v355
        %v359 = vrsqrt.pop %v327
        %v360 = vmul.f32 %v327, %v359
        %vm361 = vcmp.eq.f32.partialorder %v327, inf
        %v362 = vsel %vm361, %v327, %v360
        %vm363 = vcmp.eq.f32.partialorder %v327, 0.0
        %v364 = vand.u32 %v327, 2147483648
        %v365 = vsel %vm363, %v364, %v362
        %v366 = vrsqrt.pop %v334
        %v367 = vmul.f32 %v334, %v366
        %vm368 = vcmp.eq.f32.partialorder %v334, inf
        %v369 = vsel %vm368, %v334, %v367
        %vm370 = vcmp.eq.f32.partialorder %v334, 0.0
        %v371 = vand.u32 %v334, 2147483648
        %v372 = vsel %vm370, %v371, %v369
        %v373 = vrsqrt.pop %v337
        %v374 = vmul.f32 %v337, %v373
        %vm375 = vcmp.eq.f32.partialorder %v337, inf
        %v376 = vsel %vm375, %v337, %v374
        %vm377 = vcmp.eq.f32.partialorder %v337, 0.0
        %v378 = vand.u32 %v337, 2147483648
        %v379 = vsel %vm377, %v378, %v376
        %v380 = vmul.f32 %v344, %v358
        %v381 = vmul.f32 %v351, %v365
        %v382 = vmax.f32 %v380, 1e-08
        %v383 = vmax.f32 %v381, 1e-08
        %v384 = vrcp.pop %v382
        %v385 = vrcp.pop %v383
        %v386 = vmul.f32 %v294, %v384
        %v387 = vmul.f32 %v297, %v385
        %v388 = vmul.f32 %v344, %v372
        %v389 = vmul.f32 %v351, %v379
        %v390 = vmax.f32 %v388, 1e-08
        %v391 = vmax.f32 %v389, 1e-08
        %v392 = vrcp.pop %v390
        %v393 = vrcp.pop %v391
        %v394 = vmul.f32 %v304, %v392
        %v395 = vmul.f32 %v307, %v393
        %v396 = vsub.f32 0.5, %v386
        %v397 = vsub.f32 0.5, %v387
        %v398 = vadd.f32 %v396, %v394
        %v399 = vadd.f32 %v397, %v395
        %v400 = vmax.f32 %v398, 0.0
        %v401 = vmax.f32 %v399, 0.0
        %v402 = vlaneseq
        %v403 = vshrl.u32 %v402, 7
        %v404 = vadd.s32 %v403, 8
        %s405 = smul.u32 %s20, 16
        %v406 = vstv %s405
        %v407 = vadd.s32 %v403, %v406
        %v408 = vadd.s32 %v404, %v406
        %vm409 = vcmp.lt.s32.totalorder %v407, 32
        %vm410 = vcmp.lt.s32.totalorder %v408, 32
        %v411 = vsel %vm409, %v400, 0.0
        %v412 = vsel %vm410, %v401, 0.0
        %v413 = vadd.f32 %v411, %v412
        %v414 = vrot.slane %v413, 4
        %v415 = vadd.f32 %v413, %v414
        %v416 = vrot.slane %v415, 2
        %v417 = vadd.f32 %v415, %v416
        %v418 = vrot.slane %v417, 1
        %v419 = vadd.f32 %v417, %v418
        %vm420 = vcmask 0
        %421 = vst.msk [vmem:[%s269] sm:$0x1] %vm420, %v419
        %p422 = scmp.lt.s32.totalorder %s20, 1
        %s423 = scalar_select %p422, %s20, 1
        %s424 = scalar_lea.vmem %s3, %s423
        // Predicated region
        $region45: #{tpu_custom_call.1} parent=31 // pred_check
          %p425 = pneg %p116
        $region46: #{tpu_custom_call.1} parent=31 // pred_check_branch
          %427 = sbr.rel (%p425) target = $region48
        $region47: #{tpu_custom_call.1} parent=31 // pred_region
          _
        $region48: #{tpu_custom_call.1} parent=31 // pred_fallthru
          _
      $region32: #{tpu_custom_call.1} parent=5 // pred_fallthru
        _
      %p428 = scmp.le.s32.totalorder 2, %s15
      // Predicated region
      $region49: #{tpu_custom_call.1} parent=5 // pred_check
        %p429 = pneg %p428
      $region50: #{tpu_custom_call.1} parent=5 // pred_check_branch
        %431 = sbr.rel (%p429) target = $region52
      $region51: #{tpu_custom_call.1} parent=5 // pred_region
        %s432 = ssub.s32 %s15, 2
        // Predicated region
        $region53: #{tpu_custom_call.1} parent=51 // pred_check
          %p433 = pneg %p122
        $region54: #{tpu_custom_call.1} parent=51 // pred_check_branch
          %435 = sbr.rel (%p433) target = $region56
        $region55: #{tpu_custom_call.1} parent=51 // pred_region
          %p436 = scmp.lt.s32.totalorder %s21, 1
          %s437 = scalar_select %p436, %s21, 1
          %s438 = scalar_lea.vmem %s3, %s437
        $region56: #{tpu_custom_call.1} parent=51 // pred_fallthru
          _
      $region52: #{tpu_custom_call.1} parent=5 // pred_fallthru
        _
    $region6: #{tpu_custom_call.1} parent=1 // loop_footer
      %s19 = sadd.s32 1, %s15
    $region7: #{tpu_custom_call.1} parent=1 // loop_footer_branch
      %14 = sbr.rel target = $region3
    $region8: #{tpu_custom_call.1} parent=1 // loop_exit
      _
    %439 = vsyncpa [#allocation3], 1
    %s440 = scalar_lea.sflag [#allocation3], 1
    %441 = vsyncpa %s440, 1
    %442 = vsyncpa [#allocation5], 1
    %s443 = scalar_lea.sflag [#allocation5], 1
    %444 = vsyncpa %s443, 1

</llo_original>
